<compile_context>
chip_gen: v7x
topology: tpu7x:2x2x1
jax: 0.10.0
libtpu: 0.0.40
codegen_flags: <defaults>
</compile_context>

<pallas_src>
import jax
import jax.numpy as jnp
from jax.experimental import pallas as pl
from jax.experimental.pallas import tpu as pltpu


TILE_CAP = 65536                       # elements along N per block (~8 MiB f32 x-buffer)
VMEM_LIMIT_BYTES = 48 * 1024 * 1024    # < v7x's 64 MiB physical; > v5e's 16 MiB default


def _round_up(x, m):
    return ((x + m - 1) // m) * m


# -----------------------------------------------------------------------------
# Pallas kernels: pointwise (1x1x1) Conv3d in channel-major layout
#   W(Cout, Cin) @ X(Cin, TN) + b(Cout, 1)  [+ A(Cout, TN)]  ->  (Cout, TN)
# -----------------------------------------------------------------------------
def _pw_conv_kernel(x_ref, w_ref, b_ref, o_ref):
    acc = jnp.dot(w_ref[...], x_ref[...], preferred_element_type=jnp.float32)
    o_ref[...] = (acc + b_ref[...]).astype(o_ref.dtype)


def _pw_conv_add_kernel(x_ref, w_ref, b_ref, a_ref, o_ref):
    acc = jnp.dot(w_ref[...], x_ref[...], preferred_element_type=jnp.float32)
    acc = acc + b_ref[...] + a_ref[...].astype(jnp.float32)
    o_ref[...] = acc.astype(o_ref.dtype)


def _pick_tile_n(n_keep, n_offset, bsz, cap=TILE_CAP):
    """Choose the N tile.  Returns (tile_n, offset_in_blocks)."""
    assert n_keep > 0
    n_pad = _round_up(n_keep, 128)
    if n_offset == 0:
        steps = max(1, pl.cdiv(n_pad, cap))
        if bsz == 1 and n_pad >= 256:
            steps = max(steps, 2)          # keep v7x's 2nd TensorCore busy
        tile = min(n_pad, _round_up(pl.cdiv(n_keep, steps), 128))
        if tile > n_keep:                  # single block: use the exact full dim
            tile = n_keep
        return tile, 0
    # Offset ("free time-slice") path: tile must divide n_offset so the skipped
    # prefix is a whole number of blocks, and be a multiple of 128 (lane-dense).
    # Both are reachable because the caller guarantees n_offset % 128 == 0 and
    # n_keep >= 128 (so tile=128 always qualifies).
    assert n_offset % 128 == 0 and n_keep >= 128
    m = n_offset // 128
    divs = set()
    d = 1
    while d * d <= m:
        if m % d == 0:
            divs.add(d)
            divs.add(m // d)
        d += 1
    tiles = sorted((128 * v for v in divs if 128 * v <= min(cap, n_keep)), reverse=True)
    tile = tiles[0]
    if bsz == 1:
        for t in tiles:
            if pl.cdiv(n_keep, t) >= 2:    # >=2 grid steps when possible (v7x)
                tile = t
                break
    return tile, n_offset // tile


def pointwise_conv3d_cmajor(x_bcn, w_oc, b_o1, *, add_bcn=None, n_offset=0,
                            n_keep=None, tile_cap=TILE_CAP):
    """Pointwise conv in channel-major layout.

    x_bcn: (B, Cin, N_total).  Only elements [n_offset, n_offset+n_keep) along N
    are read (n_offset is applied as a whole-block index_map offset -> no copy).
    add_bcn: optional (B, Cout, n_keep) additive term fused into the epilogue.
    Returns (B, Cout, n_keep) in x's dtype (f32 accumulation on the MXU).
    """
    bsz, cin, n_total = x_bcn.shape
    cout = w_oc.shape[0]
    if n_keep is None:
        n_keep = n_total - n_offset
    assert n_keep > 0 and n_offset + n_keep <= n_total

    tile_n, off_blocks = _pick_tile_n(n_keep, n_offset, bsz, tile_cap)
    grid_n = pl.cdiv(n_keep, tile_n)

    in_specs = [
        # native channel-major layout, batch dim squeezed; the time_padding drop
        # is the `+ off_blocks` offset; ragged last block (input & output) is
        # handled by Pallas' clamped DMA / masked writeback.
        pl.BlockSpec((None, cin, tile_n), lambda b, i: (b, 0, i + off_blocks)),
        pl.BlockSpec((cout, cin), lambda b, i: (0, 0)),
        pl.BlockSpec((cout, 1), lambda b, i: (0, 0)),
    ]
    args = [x_bcn, w_oc.astype(x_bcn.dtype), b_o1.astype(jnp.float32)]
    if add_bcn is not None:
        in_specs.append(pl.BlockSpec((None, cout, tile_n), lambda b, i: (b, 0, i)))
        args.append(add_bcn.astype(x_bcn.dtype))
        kernel = _pw_conv_add_kernel
    else:
        kernel = _pw_conv_kernel

    return pl.pallas_call(
        kernel,
        out_shape=jax.ShapeDtypeStruct((bsz, cout, n_keep), x_bcn.dtype),
        grid_spec=pltpu.PrefetchScalarGridSpec(
            num_scalar_prefetch=0,
            grid=(bsz, grid_n),
            in_specs=in_specs,
            out_specs=pl.BlockSpec((None, cout, tile_n), lambda b, i: (b, 0, i)),
        ),
        compiler_params=pltpu.CompilerParams(
            dimension_semantics=("parallel", "parallel"),
            vmem_limit_bytes=VMEM_LIMIT_BYTES,
        ),
    )(*args)


# -----------------------------------------------------------------------------
# Module (parameters + forward)
# -----------------------------------------------------------------------------
class MagvitV2LAAdadecoderPallas:
    def __init__(self, image_size, channels=3, init_dim=32, layers=(),
                 noframe1code=False, add_code=False, time_padding=3,
                 key=jax.random.PRNGKey(0)):
        assert layers == (), "only the fully-specified layers=() config is supported"
        self.channels = channels
        self.image_size = image_size
        self.init_dim = init_dim
        self.noframe1code = noframe1code
        self.add_code = add_code
        time_downsample_factor = 1
        self.time_downsample_factor = time_downsample_factor
        self.time_padding = (time_downsample_factor - 1) if time_padding == 0 else time_padding
        self.has_cond_across_layers = []

        # conv_out = CausalConv3d(init_dim, channels, [1,1,1], stride=[1,1,1])
        kw, kb = jax.random.split(key)
        # PyTorch Conv3d weight layout (Cout, Cin, 1, 1, 1) -> store (Cout, Cin).
        self.conv_out_w = jax.random.normal(kw, (channels, init_dim), jnp.float32) * 0.02
        self.conv_out_b = (jax.random.normal(kb, (channels,), jnp.float32) * 0.02
                           ).reshape(channels, 1)

    def decode(self, quantized, cond=None, video_contains_first_frame=True,
               video_or_images=None, pre_encode_out=None):
        assert pre_encode_out is not None
        q = jnp.ones_like(quantized) if self.noframe1code else quantized
        r = pre_encode_out.shape[-2]          # reference repeats by shape[-2] on BOTH dims
        bsz, cin, t_pre, h, w_sp = pre_encode_out.shape
        hw = h * w_sp
        cout = self.channels
        w, bias = self.conv_out_w, self.conv_out_b
        tp = self.time_padding if video_contains_first_frame else 0
        video_dtype = pre_encode_out.dtype

        # decoder layer loop: zip(decoder_layers, reversed(has_cond_across_layers))
        # is empty for layers=() (trailing GroupNorm/SiLU never executed in reference).

        def conv_pre_frames(drop):
            """conv_out applied to pre_encode_out[:, :, drop:], dropping BEFORE the conv."""
            keep = t_pre - drop
            n_off = drop * hw
            n_keep = keep * hw
            if drop == 0 or (n_off % 128 == 0 and n_keep >= 128):
                # free drop: whole-block index_map offset into the full tensor
                x_flat = pre_encode_out.reshape(bsz, cin, t_pre * hw)
                return x_flat, n_off, n_keep
            # tiny / unaligned shapes: materialize the (small) slice in XLA
            x_flat = pre_encode_out[:, :, drop:].reshape(bsz, cin, n_keep)
            return x_flat, 0, n_keep

        if self.add_code:
            # reference: video = conv(pre + rep(q))[:, :, tp:]
            #          = conv(pre)[:, :, tp:] + rep(W @ q)[:, :, tp:]   (bias once)
            drop = min(tp, t_pre)
            keep = t_pre - drop
            if keep <= 0:
                return jnp.zeros((bsz, cout, 0, h, w_sp), video_dtype)
            # tiny code branch, projected before the spatial repeat (plain XLA)
            q_proj = jnp.einsum("bcthw,oc->bothw",
                                q[:, :, drop:].astype(jnp.float32), w)
            q_rep = jnp.repeat(jnp.repeat(q_proj, r, axis=-2), r, axis=-1)
            add_flat = q_rep.reshape(bsz, cout, keep * hw)
            x_flat, n_off, n_keep = conv_pre_frames(drop)
            out = pointwise_conv3d_cmajor(x_flat, w, bias, add_bcn=add_flat,
                                          n_offset=n_off, n_keep=n_keep)
            return out.reshape(bsz, cout, keep, h, w_sp)

        # concat path: video = cat([conv(pre), rep(conv(q))], time)[:, :, tp:]
        t_q = q.shape[2]
        drop_pre = min(tp, t_pre)
        drop_q = min(max(tp - t_pre, 0), t_q)
        keep_pre = t_pre - drop_pre
        keep_q = t_q - drop_q

        parts = []
        if keep_pre > 0:
            x_flat, n_off, n_keep = conv_pre_frames(drop_pre)
            conv_pre = pointwise_conv3d_cmajor(x_flat, w, bias,
                                               n_offset=n_off, n_keep=n_keep)
            parts.append(conv_pre.reshape(bsz, cout, keep_pre, h, w_sp))
        if keep_q > 0:
            # conv(repeat(q)) == repeat(conv(q)) for a pointwise conv
            q_proj = jnp.einsum("bcthw,oc->bothw",
                                q[:, :, drop_q:].astype(jnp.float32), w) \
                + bias.reshape(1, -1, 1, 1, 1)
            q_rep = jnp.repeat(jnp.repeat(q_proj, r, axis=-2), r, axis=-1)
            parts.append(q_rep.astype(video_dtype))

        if not parts:
            return jnp.zeros((bsz, cout, 0, h, w_sp), video_dtype)
        if len(parts) == 1:
            return parts[0]
        return jnp.concatenate(parts, axis=2)

    def __call__(self, quantized, pre_encode_out, video_contains_first_frame=True):
        return self.decode(quantized,
                           video_contains_first_frame=video_contains_first_frame,
                           pre_encode_out=pre_encode_out)


# -----------------------------------------------------------------------------
# Pure-JAX reference (mirrors the original op ordering exactly, in f32)
# -----------------------------------------------------------------------------
def reference_forward(model, quantized, pre_encode_out, video_contains_first_frame=True):
    q = jnp.ones_like(quantized) if model.noframe1code else quantized
    q = q.astype(jnp.float32)
    pre = pre_encode_out.astype(jnp.float32)
    r = pre.shape[-2]
    q = jnp.repeat(q, r, axis=-2)
    q = jnp.repeat(q, r, axis=-1)
    x = pre + q if model.add_code else jnp.concatenate([pre, q], axis=2)
    video = jnp.einsum("bcthw,oc->bothw", x, model.conv_out_w) \
        + model.conv_out_b.reshape(1, -1, 1, 1, 1)
    if video_contains_first_frame:
        video = video[:, :, model.time_padding:]
    return video


if __name__ == "__main__":
    key = jax.random.PRNGKey(0)
    k_q, k_p, k_params, k_q2, k_p2, k_q3 = jax.random.split(key, 6)

    init_dim = 32
    channels = 3
    B = 2
    H = W = 16         # H*W = 256 -> exercises the free (index_map offset) time-drop path
    T_pre = 4
    T_q = 2

    quantized = jax.random.normal(k_q, (B, init_dim, T_q, 1, 1), jnp.float32)
    pre_encode_out = jax.random.normal(k_p, (B, init_dim, T_pre, H, W), jnp.float32)

    # --- 1) default config (add_code=False, concat on time), offset path ---
    model = MagvitV2LAAdadecoderPallas(
        image_size=H, channels=channels, init_dim=init_dim, layers=(),
        time_padding=3, key=k_params,
    )
    video = jax.block_until_ready(model(quantized, pre_encode_out, True))
    expected = jax.block_until_ready(reference_forward(model, quantized, pre_encode_out, True))
    assert video.shape == (B, channels, T_pre + T_q - model.time_padding, H, W), video.shape
    assert jnp.allclose(video, expected, atol=1e-5, rtol=1e-5), "mismatch (concat/offset)"

    # --- 2) add_code=True (fused additive epilogue), offset path ---
    quantized2 = jax.random.normal(k_q2, (B, init_dim, T_pre, 1, 1), jnp.float32)
    model2 = MagvitV2LAAdadecoderPallas(
        image_size=H, channels=channels, init_dim=init_dim, layers=(),
        add_code=True, time_padding=3, key=k_params,
    )
    video2 = jax.block_until_ready(model2(quantized2, pre_encode_out, True))
    expected2 = jax.block_until_ready(reference_forward(model2, quantized2, pre_encode_out, True))
    assert video2.shape == expected2.shape, (video2.shape, expected2.shape)
    assert jnp.allclose(video2, expected2, atol=1e-5, rtol=1e-5), "mismatch (add_code/offset)"

    # --- 3) tiny/unaligned spatial size -> XLA-slice fallback + full-dim block ---
    H3 = W3 = 8
    quantized3 = jax.random.normal(k_q3, (B, init_dim, T_q, 1, 1), jnp.float32)
    pre3 = jax.random.normal(k_p2, (B, init_dim, T_pre, H3, W3), jnp.float32)
    model3 = MagvitV2LAAdadecoderPallas(
        image_size=H3, channels=channels, init_dim=init_dim, layers=(),
        time_padding=3, key=k_params,
    )
    video3 = jax.block_until_ready(model3(quantized3, pre3, True))
    expected3 = jax.block_until_ready(reference_forward(model3, quantized3, pre3, True))
    assert video3.shape == expected3.shape, (video3.shape, expected3.shape)
    assert jnp.allclose(video3, expected3, atol=1e-5, rtol=1e-5), "mismatch (fallback)"

    # --- 4) bf16 streaming inputs (f32 accumulation), loose tolerance ---
    video4 = jax.block_until_ready(
        model(quantized.astype(jnp.bfloat16), pre_encode_out.astype(jnp.bfloat16), True))
    assert video4.dtype == jnp.bfloat16
    assert jnp.allclose(video4.astype(jnp.float32), expected, atol=2e-2, rtol=5e-2), \
        "mismatch (bf16)"

    print("KERNEL_OK")
</pallas_src>

<mosaic_0001>
module attributes {stable_mosaic.version = 11 : i64} {
  func.func @_pw_conv_kernel(%arg0: i32, %arg1: i32, %arg2: memref<1x32x256xf32, #tpu.memory_space<vmem>>, %arg3: memref<3x32xf32, #tpu.memory_space<vmem>>, %arg4: memref<3x1xf32, #tpu.memory_space<vmem>>, %arg5: memref<1x3x256xf32, #tpu.memory_space<vmem>>) attributes {dimension_semantics = [#tpu.dimension_semantics<parallel>, #tpu.dimension_semantics<parallel>], iteration_bounds = array<i64: 2, 1>, scalar_prefetch = 0 : i64, scratch_operands = 0 : i64, tpu.core_type = #tpu.core_type<tc>, window_params = [{transform_indices = @transform_0, window_bounds = array<i64: 1, 32, 256>}, {pipeline_mode = #tpu.pipeline_mode<synchronous>, transform_indices = @transform_1, window_bounds = array<i64: 3, 32>}, {pipeline_mode = #tpu.pipeline_mode<synchronous>, transform_indices = @transform_2, window_bounds = array<i64: 3, 1>}, {transform_indices = @transform_3, window_bounds = array<i64: 1, 3, 256>}]} {
    %c0 = arith.constant 0 : index
    %c0_0 = arith.constant 0 : index
    %0 = vector.load %arg3[%c0, %c0_0] : memref<3x32xf32, #tpu.memory_space<vmem>>, vector<3x32xf32>
    %c0_1 = arith.constant 0 : index
    %c0_2 = arith.constant 0 : index
    %c0_3 = arith.constant 0 : index
    %1 = vector.load %arg2[%c0_1, %c0_2, %c0_3] : memref<1x32x256xf32, #tpu.memory_space<vmem>>, vector<1x32x256xf32>
    %2 = vector.shape_cast %1 : vector<1x32x256xf32> to vector<32x256xf32>
    %cst = arith.constant dense<0.000000e+00> : vector<3x256xf32>
    %3 = tpu.matmul %0, %2, %cst {dimension_numbers = #tpu.dot_dimension_numbers<[1], [0], [0], [1], [0, 0, 1, 1], [], []>} : vector<3x32xf32>, vector<32x256xf32>, vector<3x256xf32> -> vector<3x256xf32>
    %c0_4 = arith.constant 0 : index
    %c0_5 = arith.constant 0 : index
    %4 = vector.load %arg4[%c0_4, %c0_5] : memref<3x1xf32, #tpu.memory_space<vmem>>, vector<3x1xf32>
    %5 = vector.broadcast %4 : vector<3x1xf32> to vector<3x256xf32>
    %6 = arith.addf %3, %5 : vector<3x256xf32>
    %c0_6 = arith.constant 0 : index
    %c0_7 = arith.constant 0 : index
    %c0_8 = arith.constant 0 : index
    %7 = vector.load %arg5[%c0_6, %c0_7, %c0_8] : memref<1x3x256xf32, #tpu.memory_space<vmem>>, vector<1x3x256xf32>
    %8 = vector.shape_cast %7 : vector<1x3x256xf32> to vector<3x256xf32>
    %9 = vector.shape_cast %6 : vector<3x256xf32> to vector<1x3x256xf32>
    tpu.vector_store %arg5[%c0_6, %c0_7, %c0_8], %9 {strides = array<i32>} : memref<1x3x256xf32, #tpu.memory_space<vmem>>, vector<1x3x256xf32>,
    return
  }
  func.func @transform_0(%arg0: i32, %arg1: i32) -> (i32, i32, i32) {
    %c3_i32 = arith.constant 3 : i32
    %0 = arith.addi %arg1, %c3_i32 : i32
    %c0_i32 = arith.constant 0 : i32
    %c0_i32_0 = arith.constant 0 : i32
    return %arg0, %c0_i32, %0 : i32, i32, i32
  }
  func.func @transform_1(%arg0: i32, %arg1: i32) -> (i32, i32) {
    %c0_i32 = arith.constant 0 : i32
    %c0_i32_0 = arith.constant 0 : i32
    %c0_i32_1 = arith.constant 0 : i32
    return %c0_i32, %c0_i32_0 : i32, i32
  }
  func.func @transform_2(%arg0: i32, %arg1: i32) -> (i32, i32) {
    %c0_i32 = arith.constant 0 : i32
    %c0_i32_0 = arith.constant 0 : i32
    %c0_i32_1 = arith.constant 0 : i32
    return %c0_i32, %c0_i32_0 : i32, i32
  }
  func.func @transform_3(%arg0: i32, %arg1: i32) -> (i32, i32, i32) {
    %c0_i32 = arith.constant 0 : i32
    %c0_i32_0 = arith.constant 0 : i32
    return %arg0, %c0_i32, %arg1 : i32, i32, i32
  }
}

</mosaic_0001>

<llo_original>
// kernel: tpu_custom_call.1
$region0: #{tpu_custom_call.1}
  #allocation0 [shape = 'u32[]', space=smem, size = 0x4, offset = 0x4, fixed_abs, tag = 'smem constant byte address 0x4 - core index']
  #allocation1 [shape = 'u32[144,128]{1,0:T(1,128)}', space=vmem, size = 0x12000, scoped, tag = 'internal scratch']
  %s0 = inlined_call_operand.hbm [shape: f32[2,32,1024], index: 0, kind: input, shape index: {}]
  %s1 = inlined_call_operand.vmem [shape: f32[3,32], index: 1, kind: input, shape index: {}]
  %s2 = inlined_call_operand.vmem [shape: f32[3,1], index: 2, kind: input, shape index: {}]
  %s3 = inlined_call_operand.vmem [shape: f32[2,3,256], index: 3, kind: output, shape index: {}]
  %s4 = sld [smem:[#allocation0]]
  $region49: #{tpu_custom_call.1} parent=0
    _
  %s6 = ssub.s32 1, %s4
  %s7 = scalar_select 0, %s6, %s4
  $region1: #{tpu_custom_call.1} parent=0
    #allocation2 [shape = 'u8[65536]{0}', space=vmem, size = 0x10000, scoped, tag = 'input window, operand 0']
    #allocation3 [shape = 's32[2]{0}', space=sflag, size = 0x8, scoped, tag = 'scoped memory for tpu_custom_call.1']
    %8 = vsyncpa [#allocation3], 0
    %s9 = scalar_lea.sflag [#allocation3], 1
    %10 = vsyncpa %s9, 0
    loop: start=0, step=1, limit=4
    $region2: #{tpu_custom_call.1} parent=1 // loop_pre_header
      _
    $region3: #{tpu_custom_call.1} parent=1 // loop_header
      %s12 = sphi 0, %s16
      %p13 = scmp.ge.s32.totalorder %s12, 4
      %s19 = sphi 0, %s31
      %s20 = sphi 0, %s27
      %s21 = sphi 0, %s19
      %s22 = sphi 0, %s20
      %s23 = sphi 0, %s21
      %s24 = sphi 0, %s22
      %s38 = sphi 0, %s40
      %s41 = sphi 0, %s38
      %s42 = sphi 0, %s41
      %s58 = sphi 0, %s42
      %s62 = sphi 0, %s62
      %s64 = sphi 0, %s62
      %s65 = sphi 0, %s64
      %s79 = sphi 0, %s65
      %s83 = sphi 0, %s83
      %s85 = sphi 0, %s83
      %s86 = sphi 0, %s85
      %s100 = sphi 0, %s86
      %s108 = sphi 0, %s110
      %s111 = sphi 0, %s108
      %s112 = sphi 0, %s111
      %s128 = sphi 0, %s112
    $region4: #{tpu_custom_call.1} parent=1 // loop_header_branch
      %15 = sbr.rel (%p13) target = $region8
    $region5: #{tpu_custom_call.1} parent=1 // loop_body
      %s17 = ssub.s32 %s12, 1
      %s18 = ssub.s32 %s12, 2
      %s25 = sadd.s32 1, %s20
      %p26 = scmp.ge.s32.totalorder %s25, 1
      %s27 = scalar_select %p26, 0, %s25
      %s28 = sadd.s32 1, %s19
      %s29 = scalar_select %p26, %s28, %s19
      %p30 = scmp.ge.s32.totalorder %s29, 2
      %s31 = scalar_select %p30, 0, %s29
      %s32 = sadd.s32 %s20, 3
      %s33 = sadd.s32 %s27, 3
      %s34 = ssub.s32 %s19, %s31
      %s35 = ssub.s32 %s32, %s33
      %s36 = sor.u32 %s34, %s35
      %p37 = scmp.eq.s32.totalorder %s36, 0
      %s39 = sadd.s32 %s38, 1
      %s40 = scalar_select %p37, %s38, %s39
      %p43 = pneg %p37
      %p44 = scmp.eq.s32.totalorder %s12, 1
      %p45 = por %p43, %p44
      %p46 = scmp.ne.s32.totalorder %s38, %s41
      %p47 = scmp.eq.s32.totalorder %s12, 0
      %p48 = por %p46, %p47
      %p49 = scmp.ne.s32.totalorder %s38, %s41
      %p50 = scmp.eq.s32.totalorder %s17, 1
      %p51 = por %p49, %p50
      %p52 = scmp.ne.s32.totalorder %s41, %s42
      %p53 = scmp.eq.s32.totalorder %s17, 0
      %p54 = por %p52, %p53
      %p55 = scmp.ne.s32.totalorder %s41, %s42
      %p56 = scmp.eq.s32.totalorder %s18, 1
      %p57 = por %p55, %p56
      %p59 = scmp.ne.s32.totalorder %s42, %s58
      %p60 = scmp.eq.s32.totalorder %s18, 0
      %p61 = por %p59, %p60
      %s63 = sadd.s32 %s62, 1
      %p66 = scmp.eq.s32.totalorder %s12, 1
      %p67 = scmp.ne.s32.totalorder %s62, %s64
      %p68 = scmp.eq.s32.totalorder %s12, 0
      %p69 = por %p67, %p68
      %p70 = scmp.ne.s32.totalorder %s62, %s64
      %p71 = scmp.eq.s32.totalorder %s17, 1
      %p72 = por %p70, %p71
      %p73 = scmp.ne.s32.totalorder %s64, %s65
      %p74 = scmp.eq.s32.totalorder %s17, 0
      %p75 = por %p73, %p74
      %p76 = scmp.ne.s32.totalorder %s64, %s65
      %p77 = scmp.eq.s32.totalorder %s18, 1
      %p78 = por %p76, %p77
      %p80 = scmp.ne.s32.totalorder %s65, %s79
      %p81 = scmp.eq.s32.totalorder %s18, 0
      %p82 = por %p80, %p81
      %s84 = sadd.s32 %s83, 1
      %p87 = scmp.eq.s32.totalorder %s12, 1
      %p88 = scmp.ne.s32.totalorder %s83, %s85
      %p89 = scmp.eq.s32.totalorder %s12, 0
      %p90 = por %p88, %p89
      %p91 = scmp.ne.s32.totalorder %s83, %s85
      %p92 = scmp.eq.s32.totalorder %s17, 1
      %p93 = por %p91, %p92
      %p94 = scmp.ne.s32.totalorder %s85, %s86
      %p95 = scmp.eq.s32.totalorder %s17, 0
      %p96 = por %p94, %p95
      %p97 = scmp.ne.s32.totalorder %s85, %s86
      %p98 = scmp.eq.s32.totalorder %s18, 1
      %p99 = por %p97, %p98
      %p101 = scmp.ne.s32.totalorder %s86, %s100
      %p102 = scmp.eq.s32.totalorder %s18, 0
      %p103 = por %p101, %p102
      %s104 = ssub.s32 %s19, %s31
      %s105 = ssub.s32 %s20, %s27
      %s106 = sor.u32 %s104, %s105
      %p107 = scmp.eq.s32.totalorder %s106, 0
      %s109 = sadd.s32 %s108, 1
      %s110 = scalar_select %p107, %s108, %s109
      %p113 = pneg %p107
      %p114 = scmp.eq.s32.totalorder %s12, 1
      %p115 = por %p113, %p114
      %p116 = scmp.ne.s32.totalorder %s108, %s111
      %p117 = scmp.eq.s32.totalorder %s12, 0
      %p118 = por %p116, %p117
      %p119 = scmp.ne.s32.totalorder %s108, %s111
      %p120 = scmp.eq.s32.totalorder %s17, 1
      %p121 = por %p119, %p120
      %p122 = scmp.ne.s32.totalorder %s111, %s112
      %p123 = scmp.eq.s32.totalorder %s17, 0
      %p124 = por %p122, %p123
      %p125 = scmp.ne.s32.totalorder %s111, %s112
      %p126 = scmp.eq.s32.totalorder %s18, 1
      %p127 = por %p125, %p126
      %p129 = scmp.ne.s32.totalorder %s112, %s128
      %p130 = scmp.eq.s32.totalorder %s18, 0
      %p131 = por %p129, %p130
      %p132 = scmp.le.s32.totalorder 1, %s12
      %p133 = scmp.lt.s32.totalorder %s12, 3
      %p134 = pnand %p132, %p133
      %p135 = pneg %p134
      // Predicated region
      $region9: #{tpu_custom_call.1} parent=5 // pred_check
        _
      $region10: #{tpu_custom_call.1} parent=5 // pred_check_branch
        %137 = sbr.rel (%p134) target = $region12
      $region11: #{tpu_custom_call.1} parent=5 // pred_region
        %s138 = ssub.s32 %s12, 1
        // Predicated region
        $region13: #{tpu_custom_call.1} parent=11 // pred_check
          %p139 = pneg %p75
        $region14: #{tpu_custom_call.1} parent=11 // pred_check_branch
          %141 = sbr.rel (%p139) target = $region16
        $region15: #{tpu_custom_call.1} parent=11 // pred_region
          _
        $region16: #{tpu_custom_call.1} parent=11 // pred_fallthru
          _
        // Predicated region
        $region17: #{tpu_custom_call.1} parent=11 // pred_check
          %p142 = pneg %p96
        $region18: #{tpu_custom_call.1} parent=11 // pred_check_branch
          %144 = sbr.rel (%p142) target = $region20
        $region19: #{tpu_custom_call.1} parent=11 // pred_region
          _
        $region20: #{tpu_custom_call.1} parent=11 // pred_fallthru
          _
      $region12: #{tpu_custom_call.1} parent=5 // pred_fallthru
        _
      %p145 = scmp.lt.s32.totalorder %s12, 2
      // Predicated region
      $region21: #{tpu_custom_call.1} parent=5 // pred_check
        %p146 = pneg %p145
      $region22: #{tpu_custom_call.1} parent=5 // pred_check_branch
        %148 = sbr.rel (%p146) target = $region24
      $region23: #{tpu_custom_call.1} parent=5 // pred_region
        // Predicated region
        $region25: #{tpu_custom_call.1} parent=23 // pred_check
          %p149 = pneg %p48
        $region26: #{tpu_custom_call.1} parent=23 // pred_check_branch
          %151 = sbr.rel (%p149) target = $region28
        $region27: #{tpu_custom_call.1} parent=23 // pred_region
          %s152 = sand.u32 %s38, 1
          %s153 = scalar_lea.sflag [#allocation3], %s152
          %s154 = sand.u32 %s38, 1
          %s155 = smul.addr %s154, 64
          %s156 = scalar_lea.vmem [#allocation2], %s155
          %s157 = sadd.s32 %s20, 3
          %s158 = smul.u32 2, %s157
          %s160 = ssub.s32 1024, 1024
          %161 = vsyncadd %s153, %s160
          %s162 = smul.addr %s19, 32
          %s163 = sadd.s32 %s158, %s162
          %s164 = smul.addr %s163, 128
          %s165 = scalar_lea.hbm %s0, %s164
          %s166 = sshll.u32 %s156, 4
          %s167 = int_to_ptr.vmem [resolvable:$true] %s166
          %172 = dma.hbm_to_vmem [thread:$0]  %s165, 1024, %s167, %s153, 1024, 256, 16
        $region28: #{tpu_custom_call.1} parent=23 // pred_fallthru
          _
      $region24: #{tpu_custom_call.1} parent=5 // pred_fallthru
        _
      %p173 = scmp.le.s32.totalorder 1, %s12
      %p174 = scmp.lt.s32.totalorder %s12, 3
      %p175 = pnand %p173, %p174
      %p176 = pneg %p175
      // Predicated region
      $region29: #{tpu_custom_call.1} parent=5 // pred_check
        _
      $region30: #{tpu_custom_call.1} parent=5 // pred_check_branch
        %178 = sbr.rel (%p175) target = $region32
      $region31: #{tpu_custom_call.1} parent=5 // pred_region
        %s179 = ssub.s32 %s12, 1
        %s180 = sand.u32 %s41, 1
        %s181 = scalar_lea.sflag [#allocation3], %s180
        %s182 = sand.u32 %s41, 1
        %s183 = smul.addr %s182, 64
        %s184 = scalar_lea.vmem [#allocation2], %s183
        // Predicated region
        $region33: #{tpu_custom_call.1} parent=31 // pred_check
          %p185 = pneg %p54
        $region34: #{tpu_custom_call.1} parent=31 // pred_check_branch
          %187 = sbr.rel (%p185) target = $region36
        $region35: #{tpu_custom_call.1} parent=31 // pred_region
          %188 = dma.done %s181, 1024
        $region36: #{tpu_custom_call.1} parent=31 // pred_fallthru
          _
        %s189 = sand.u32 %s41, 1
        %s190 = scalar_lea.sflag [#allocation3], %s189
        %s191 = sand.u32 %s41, 1
        %s192 = smul.addr %s191, 64
        %s193 = scalar_lea.vmem [#allocation2], %s192
        %p194 = pneg %p54
        %p195 = pneg %p51
        %p196 = pneg %p75
        %p197 = pneg %p72
        %p198 = pneg %p96
        %p199 = pneg %p93
        %p200 = pneg %p124
        %p201 = pneg %p121
        %s202 = smul.u32 2, %s22
        %p203 = scmp.lt.s32.totalorder %s21, 1
        %s204 = scalar_select %p203, %s21, 1
        %p205 = scmp.lt.s32.totalorder %s202, 1
        %s206 = scalar_select %p205, %s202, 1
        %s207 = smul.addr %s204, 2
        %s208 = sadd.s32 %s206, %s207
        %s209 = smul.addr %s208, 4
        %s210 = scalar_lea.vmem %s3, %s209
        %s211 = sadd.s32 %s22, 3
        %s212 = smul.u32 2, %s211
        %s213 = smul.u32 2, %s22
        %p214 = scmp.lt.s32.totalorder %s21, 1
        %s215 = scalar_select %p214, %s21, 1
        %p216 = scmp.lt.s32.totalorder %s213, 1
        %s217 = scalar_select %p216, %s213, 1
        %s218 = smul.addr %s215, 2
        %s219 = sadd.s32 %s217, %s218
        %s220 = smul.addr %s219, 4
        %s221 = scalar_lea.vmem %s3, %s220
        %s222 = smul.u32 2, %s22
        %v223 = vld [vmem:[%s1] sm:$0x7]
        %v224 = vld [vmem:[%s184] sm:$0xff]
        %v225 = vld [vmem:[%s184 + $0x8] sm:$0xff]
        %v226 = vld [vmem:[%s184 + $0x10] sm:$0xff]
        %v227 = vld [vmem:[%s184 + $0x18] sm:$0xff]
        %v228 = vld [vmem:[%s184 + $0x20] sm:$0xff]
        %v229 = vld [vmem:[%s184 + $0x28] sm:$0xff]
        %v230 = vld [vmem:[%s184 + $0x30] sm:$0xff]
        %v231 = vld [vmem:[%s184 + $0x38] sm:$0xff]
        %v232 = vld [vmem:[%s2] sm:$0x7]
        %234 = vset.pattern.permute.xlu0 0
        %235 = vperm.xlu0 %234, %v232
        %v236 = vpop.permute.xlu0 %235
        %vm238 = vcmask 261120
        %v240 = vsel %vm238, %v223, 0
        %242 = vmatprep.subr.mxu0 %v225
        %243 = vmatpush1.msra.mxu0 %v224
        %244 = vmatprep.subr.mxu0 %v227
        %245 = vmatpush1.msra.mxu0 %v226
        %246 = vmatprep.subr.mxu0 %v229
        %247 = vmatpush1.msra.mxu0 %v228
        %248 = vmatprep.subr.mxu0 %v231
        %249 = vmatpush1.msra.mxu0 %v230
        %250 = vmatprep.subr.mxu0 0.0
        %251 = vmatpush1.msra.mxu0 0.0
        %252 = vmatprep.subr.mxu0 0.0
        %253 = vmatpush1.msra.mxu0 0.0
        %254 = vmatprep.subr.mxu0 0.0
        %255 = vmatpush1.msra.mxu0 0.0
        %256 = vmatprep.subr.mxu0 0.0
        %257 = vmatpush1.msra.mxu0 0.0
        %258 = vmatprep.subr.mxu0 0.0
        %259 = vmatpush1.msra.mxu0 0.0
        %260 = vmatprep.subr.mxu0 0.0
        %261 = vmatpush1.msra.mxu0 0.0
        %262 = vmatprep.subr.mxu0 0.0
        %263 = vmatpush1.msra.mxu0 0.0
        %264 = vmatprep.subr.mxu0 0.0
        %265 = vmatpush1.msra.mxu0 0.0
        %266 = vmatprep.subr.mxu0 0.0
        %267 = vmatpush1.msra.mxu0 0.0
        %268 = vmatprep.subr.mxu0 0.0
        %269 = vmatpush1.msra.mxu0 0.0
        %270 = vmatprep.subr.mxu0 0.0
        %271 = vmatpush1.msra.mxu0 0.0
        %272 = vmatprep.subr.mxu0 0.0
        %273 = vmatpush1.msra.mxu0 0.0
        %274 = vmatprep.subr.mxu0 0.0
        %275 = vmatpush1.msra.mxu0 0.0
        %276 = vmatprep.subr.mxu0 0.0
        %277 = vmatpush1.msra.mxu0 0.0
        %278 = vmatprep.subr.mxu0 0.0
        %279 = vmatpush1.msra.mxu0 0.0
        %280 = vmatprep.subr.mxu0 0.0
        %281 = vmatpush1.msra.mxu0 0.0
        %282 = vmatprep.subr.mxu0 0.0
        %283 = vmatpush1.msra.mxu0 0.0
        %284 = vmatprep.subr.mxu0 0.0
        %285 = vmatpush1.msra.mxu0 0.0
        %286 = vmatprep.subr.mxu0 0.0
        %287 = vmatpush1.msra.mxu0 0.0
        %288 = vmatprep.subr.mxu0 0.0
        %289 = vmatpush1.msra.mxu0 0.0
        %290 = vmatprep.subr.mxu0 0.0
        %291 = vmatpush1.msra.mxu0 0.0
        %292 = vmatprep.subr.mxu0 0.0
        %293 = vmatpush1.msra.mxu0 0.0
        %294 = vmatprep.subr.mxu0 0.0
        %295 = vmatpush1.msra.mxu0 0.0
        %296 = vmatprep.subr.mxu0 0.0
        %297 = vmatpush1.msra.mxu0 0.0
        %298 = vmatprep.subr.mxu0 0.0
        %299 = vmatpush1.msra.mxu0 0.0
        %300 = vmatprep.subr.mxu0 0.0
        %301 = vmatpush1.msra.mxu0 0.0
        %302 = vmatprep.subr.mxu0 0.0
        %303 = vmatpush1.msra.mxu0 0.0
        %304 = vmatprep.subr.mxu0 0.0
        %305 = vmatpush1.msra.mxu0 0.0
        %306 = vmatprep.mubr.f32.mxu0 0.0
        %307 = vmatmul.mubr.f32.gmra.mrb[0].mxu0 %v240
        %v308 = vpop.f32.mrb[0].mxu0
        %v309 = vadd.f32 %v236, %v308
        %v310 = vpop.f32.mrb[0].mxu0
        %v311 = vadd.f32 %v236, %v310
        %312 = vdwg.mxu0
        %v315 = vcombine.low %v309, %v311
        %317 = vst [vmem:[%s221] sm:$0x77] %v315
        %s318 = smul.u32 2, %s22
        %p319 = scmp.lt.s32.totalorder %s21, 1
        %s320 = scalar_select %p319, %s21, 1
        %p321 = scmp.lt.s32.totalorder %s318, 1
        %s322 = scalar_select %p321, %s318, 1
        %s323 = smul.addr %s320, 2
        %s324 = sadd.s32 %s322, %s323
        %s325 = smul.addr %s324, 4
        %s326 = scalar_lea.vmem %s3, %s325
        // Predicated region
        $region37: #{tpu_custom_call.1} parent=31 // pred_check
          %p327 = pneg %p121
        $region38: #{tpu_custom_call.1} parent=31 // pred_check_branch
          %329 = sbr.rel (%p327) target = $region40
        $region39: #{tpu_custom_call.1} parent=31 // pred_region
          %s330 = smul.u32 2, %s22
        $region40: #{tpu_custom_call.1} parent=31 // pred_fallthru
          _
      $region32: #{tpu_custom_call.1} parent=5 // pred_fallthru
        _
      %p331 = scmp.le.s32.totalorder 2, %s12
      // Predicated region
      $region41: #{tpu_custom_call.1} parent=5 // pred_check
        %p332 = pneg %p331
      $region42: #{tpu_custom_call.1} parent=5 // pred_check_branch
        %334 = sbr.rel (%p332) target = $region44
      $region43: #{tpu_custom_call.1} parent=5 // pred_region
        %s335 = ssub.s32 %s12, 2
        // Predicated region
        $region45: #{tpu_custom_call.1} parent=43 // pred_check
          %p336 = pneg %p127
        $region46: #{tpu_custom_call.1} parent=43 // pred_check_branch
          %338 = sbr.rel (%p336) target = $region48
        $region47: #{tpu_custom_call.1} parent=43 // pred_region
          %s339 = smul.u32 2, %s24
          %p340 = scmp.lt.s32.totalorder %s23, 1
          %s341 = scalar_select %p340, %s23, 1
          %p342 = scmp.lt.s32.totalorder %s339, 1
          %s343 = scalar_select %p342, %s339, 1
          %s344 = smul.addr %s341, 2
          %s345 = sadd.s32 %s343, %s344
          %s346 = smul.addr %s345, 4
          %s347 = scalar_lea.vmem %s3, %s346
        $region48: #{tpu_custom_call.1} parent=43 // pred_fallthru
          _
      $region44: #{tpu_custom_call.1} parent=5 // pred_fallthru
        _
    $region6: #{tpu_custom_call.1} parent=1 // loop_footer
      %s16 = sadd.s32 1, %s12
    $region7: #{tpu_custom_call.1} parent=1 // loop_footer_branch
      %11 = sbr.rel target = $region3
    $region8: #{tpu_custom_call.1} parent=1 // loop_exit
      _
    %348 = vsyncpa [#allocation3], 1
    %s349 = scalar_lea.sflag [#allocation3], 1
    %350 = vsyncpa %s349, 1

</llo_original>
